<compile_context>
chip_gen: v5e
topology: v5e:2x2
jax: 0.10.0
libtpu: 0.0.40
codegen_flags: <defaults>
</compile_context>

<pallas_src>
import functools

import jax
import jax.numpy as jnp
from jax.experimental import pallas as pl
from jax.experimental.pallas import tpu as pltpu


# ---------------------------------------------------------------------------
# Fast path: one pass over x, grid over batch only (full (C, H) row per step).
# ---------------------------------------------------------------------------
def _se_kernel(x_ref, w1t_ref, b1_ref, w2t_ref, b2_ref, o_ref):
    x = x_ref[...]                                            # (bb, C, H), native dtype
    inv_h = jnp.float32(1.0 / x.shape[2])

    # Squeeze: mean over H (lane axis), accumulated in f32 without holding a
    # full f32 copy of the tile.
    sq = jnp.sum(x, axis=2, dtype=jnp.float32) * inv_h        # (bb, C) f32

    # Excitation MLP (weights pre-transposed -> plain row-major f32 dots).
    h = jnp.dot(sq, w1t_ref[...],
                preferred_element_type=jnp.float32) + b1_ref[...]   # (bb, C_red)
    h = jnp.maximum(h, 0.0)                                    # ReLU
    s = jnp.dot(h, w2t_ref[...],
                preferred_element_type=jnp.float32) + b2_ref[...]   # (bb, C)
    s = jax.nn.sigmoid(s)

    # Excite: broadcast per-(b, c) scale along H (lanes).  Native-dtype
    # multiply (matches the PyTorch module); padded tail batch rows compute on
    # garbage but their out-of-bounds writes are discarded — do NOT "fix" this
    # into a denominator that includes padding.
    o_ref[...] = x * s[:, :, None].astype(o_ref.dtype)


# ---------------------------------------------------------------------------
# Fallback path (two passes), for rows too large to double-buffer in VMEM.
# ---------------------------------------------------------------------------
def _squeeze_mlp_kernel(x_ref, w1t_ref, b1_ref, w2t_ref, b2_ref, s_ref,
                        acc_ref, *, h_total):
    h_id = pl.program_id(1)

    @pl.when(h_id == 0)
    def _():
        acc_ref[...] = jnp.zeros_like(acc_ref)

    x = x_ref[...]                                            # (bb, C, bh)
    # Mask the padded H tail of the last tile so it never enters the mean.
    rem = h_total - h_id * x.shape[2]
    valid = jax.lax.broadcasted_iota(jnp.int32, x.shape, 2) < rem
    acc_ref[...] += jnp.sum(jnp.where(valid, x.astype(jnp.float32), 0.0), axis=2)

    @pl.when(h_id == pl.num_programs(1) - 1)
    def _():
        sq = acc_ref[...] * jnp.float32(1.0 / h_total)        # (bb, C)
        h = jnp.maximum(
            jnp.dot(sq, w1t_ref[...],
                    preferred_element_type=jnp.float32) + b1_ref[...], 0.0)
        s = jax.nn.sigmoid(
            jnp.dot(h, w2t_ref[...],
                    preferred_element_type=jnp.float32) + b2_ref[...])
        s_ref[...] = s[:, :, None]                            # (bb, C, 1) f32


def _excite_kernel(x_ref, s_ref, o_ref):
    x = x_ref[...]                                            # (bb, C, bh)
    o_ref[...] = x * s_ref[...].astype(o_ref.dtype)           # broadcast over H


# ---------------------------------------------------------------------------
# Wrapper
# ---------------------------------------------------------------------------
def _device_target_tile_bytes():
    """Per-generation x-tile target for this memory-bound kernel."""
    try:
        kind = jax.devices()[0].device_kind.lower()
    except Exception:  # pragma: no cover - defensive; falls back to default
        kind = ""
    if "v5" in kind:
        return 2 << 20      # v5e: already ~roofline at 2 MiB tiles
    if "v6" in kind:
        return 4 << 20      # v6e: mem-bound tiling knee around 4 MiB
    if "7" in kind:
        return 8 << 20      # v7x: 3.2 TB/s HBM needs big tiles to hide overhead
    return 4 << 20          # unknown generation: conservative default


def channel_se_1d(x, w1, b1, w2, b2, *, block_b=None, block_h=None):
    """SE forward matching PyTorch ChannelSELayer1d, NCH layout end-to-end.

    x: (B, C, H); w1: (C_red, C); b1: (C_red,); w2: (C, C_red); b2: (C,).
    Returns (B, C, H) in x.dtype.
    """
    B, C, H = x.shape
    C_red = w1.shape[0]
    itemsize = x.dtype.itemsize

    # Tiny, resident parameters: pre-transpose, cast to f32, 2-D biases so
    # every VMEM ref is >= 2-D and both dots are plain f32 row-major matmuls.
    w1_t = jnp.swapaxes(w1, 0, 1).astype(jnp.float32)          # (C, C_red)
    w2_t = jnp.swapaxes(w2, 0, 1).astype(jnp.float32)          # (C_red, C)
    b1_2d = b1.reshape(1, C_red).astype(jnp.float32)
    b2_2d = b2.reshape(1, C).astype(jnp.float32)
    param_bytes = 4 * (2 * C * C_red + C_red + C)

    target_bytes = _device_target_tile_bytes()
    per_row = max(C * H * itemsize, 1)

    # Fall back to the two-pass H-tiled path when a single (C, H) row is too
    # big to double-buffer against the per-generation target (or when forced).
    use_h_tiling = (block_h is not None) or (
        block_b is None and per_row > target_bytes and H >= 256)

    if not use_h_tiling:
        # ------------------------- fast path -------------------------------
        if block_b is None:
            block_b = int(max(1, min(B, target_bytes // per_row)))
            if block_b >= 8:                    # sublane-align (bb, C) matmul operand
                block_b = (block_b // 8) * 8
            # Keep >= 4 grid steps when B allows: >= 2 per TensorCore on v7x
            # megacore and a genuinely double-buffered pipeline everywhere.
            while pl.cdiv(B, block_b) < 4 and block_b > 1:
                block_b = max(1, block_b // 2)
        block_b = int(block_b)
        grid = (pl.cdiv(B, block_b),)

        tile_bytes = block_b * C * H * itemsize
        # 2x in + 2x out pipeline buffers + resident params + slack.
        vmem_needed = 4 * tile_bytes + param_bytes + (2 << 20)
        vmem_limit = int(min(max(vmem_needed, 24 << 20), 48 << 20))
        # TODO(synk): rows with huge C but small H (> ~12 MiB per row) would
        # need C-tiling of the excite; not implemented (clamped VMEM limit).

        x_spec = pl.BlockSpec((block_b, C, H), lambda b: (b, 0, 0))
        o_spec = pl.BlockSpec((block_b, C, H), lambda b: (b, 0, 0))
        # Constant index_maps: parameters stay resident in VMEM across steps.
        w1_spec = pl.BlockSpec((C, C_red), lambda b: (0, 0))
        b1_spec = pl.BlockSpec((1, C_red), lambda b: (0, 0))
        w2_spec = pl.BlockSpec((C_red, C), lambda b: (0, 0))
        b2_spec = pl.BlockSpec((1, C), lambda b: (0, 0))

        cost = pl.CostEstimate(
            flops=4 * B * C * C_red + 2 * B * C * H,
            transcendentals=B * C,
            bytes_accessed=2 * B * C * H * itemsize + param_bytes,
        )

        return pl.pallas_call(
            _se_kernel,
            out_shape=jax.ShapeDtypeStruct((B, C, H), x.dtype),
            grid=grid,
            in_specs=[x_spec, w1_spec, b1_spec, w2_spec, b2_spec],
            out_specs=o_spec,
            compiler_params=pltpu.CompilerParams(
                dimension_semantics=("parallel",),
                vmem_limit_bytes=vmem_limit),
            cost_estimate=cost,
        )(x, w1_t, b1_2d, w2_t, b2_2d)

    # --------------------------- fallback path -----------------------------
    # Two passes: (1) squeeze accumulation over H tiles + MLP -> scale,
    #             (2) excite.  3 HBM passes over x, but always fits VMEM.
    if block_h is None:
        block_h = max(128, (target_bytes // max(C * itemsize, 1)) // 128 * 128)
    block_h = int(min(block_h, H))
    if block_h != H and block_h % 128 != 0:
        block_h = max(128, (block_h // 128) * 128)   # lane-aligned H tiles
    if block_b is None:
        block_b = 1                                  # fallback implies huge rows
    block_b = int(block_b)

    grid = (pl.cdiv(B, block_b), pl.cdiv(H, block_h))
    tile_bytes = block_b * C * block_h * itemsize
    vmem_needed = 4 * tile_bytes + param_bytes + 4 * block_b * C * 4 + (2 << 20)
    vmem_limit = int(min(max(vmem_needed, 24 << 20), 48 << 20))

    x_spec = pl.BlockSpec((block_b, C, block_h), lambda b, h: (b, 0, h))
    s_spec = pl.BlockSpec((block_b, C, 1), lambda b, h: (b, 0, 0))
    w1_spec = pl.BlockSpec((C, C_red), lambda b, h: (0, 0))
    b1_spec = pl.BlockSpec((1, C_red), lambda b, h: (0, 0))
    w2_spec = pl.BlockSpec((C_red, C), lambda b, h: (0, 0))
    b2_spec = pl.BlockSpec((1, C), lambda b, h: (0, 0))

    # Pass 1: squeeze (accumulated over the "arbitrary" H axis) + MLP -> scale.
    scale = pl.pallas_call(
        functools.partial(_squeeze_mlp_kernel, h_total=H),
        out_shape=jax.ShapeDtypeStruct((B, C, 1), jnp.float32),
        grid=grid,
        in_specs=[x_spec, w1_spec, b1_spec, w2_spec, b2_spec],
        out_specs=s_spec,
        scratch_shapes=[pltpu.VMEM((block_b, C), jnp.float32)],
        compiler_params=pltpu.CompilerParams(
            dimension_semantics=("parallel", "arbitrary"),
            vmem_limit_bytes=vmem_limit),
        cost_estimate=pl.CostEstimate(
            flops=4 * B * C * C_red + 2 * B * C * H,
            transcendentals=B * C,
            bytes_accessed=B * C * H * itemsize + param_bytes + B * C * 4),
    )(x, w1_t, b1_2d, w2_t, b2_2d)

    # Pass 2: excite (x * scale), fully parallel grid.
    return pl.pallas_call(
        _excite_kernel,
        out_shape=jax.ShapeDtypeStruct((B, C, H), x.dtype),
        grid=grid,
        in_specs=[x_spec, s_spec],
        out_specs=x_spec,
        compiler_params=pltpu.CompilerParams(
            dimension_semantics=("parallel", "parallel"),
            vmem_limit_bytes=vmem_limit),
        cost_estimate=pl.CostEstimate(
            flops=B * C * H,
            transcendentals=0,
            bytes_accessed=2 * B * C * H * itemsize + B * C * 4),
    )(x, scale)


def _reference(x, w1, b1, w2, b2):
    xf = x.astype(jnp.float32)
    sq = jnp.mean(xf, axis=2)
    h = jnp.maximum(sq @ w1.astype(jnp.float32).T + b1.astype(jnp.float32), 0.0)
    s = jax.nn.sigmoid(h @ w2.astype(jnp.float32).T + b2.astype(jnp.float32))
    return (xf * s[:, :, None]).astype(x.dtype)


if __name__ == "__main__":
    key = jax.random.PRNGKey(0)
    kx, k1, k2, k3, k4, kx2 = jax.random.split(key, 6)

    # Shapes consistent with the module: batch=2, channels=8, H=16,
    # reduction_ratio=4 -> reduced channels = 2.
    B, C, H = 2, 8, 16
    reduction_ratio = 4
    C_red = C // reduction_ratio

    x = jax.random.normal(kx, (B, C, H), dtype=jnp.float32)
    # Deterministic synthetic parameters (shapes match nn.Linear weights).
    w1 = jax.random.normal(k1, (C_red, C), dtype=jnp.float32) * 0.1
    b1 = jax.random.normal(k2, (C_red,), dtype=jnp.float32) * 0.1
    w2 = jax.random.normal(k3, (C, C_red), dtype=jnp.float32) * 0.1
    b2 = jax.random.normal(k4, (C,), dtype=jnp.float32) * 0.1

    # Fast path (single pass, NCH, grid over batch; heuristic -> 2-step grid).
    out = channel_se_1d(x, w1, b1, w2, b2)
    jax.block_until_ready(out)
    ref = _reference(x, w1, b1, w2, b2)
    assert out.shape == (B, C, H)
    assert jnp.allclose(out, ref, atol=1e-5, rtol=1e-5)

    # Two-pass H-tiled fallback (forced via block_h) on a longer sequence.
    H2 = 384
    x2 = jax.random.normal(kx2, (B, C, H2), dtype=jnp.float32)
    out2 = channel_se_1d(x2, w1, b1, w2, b2, block_h=128)
    jax.block_until_ready(out2)
    ref2 = _reference(x2, w1, b1, w2, b2)
    assert out2.shape == (B, C, H2)
    assert jnp.allclose(out2, ref2, atol=1e-5, rtol=1e-5)

    print("KERNEL_OK")
</pallas_src>

<mosaic_0001>
module attributes {stable_mosaic.version = 11 : i64} {
  func.func @_se_kernel(%arg0: i32, %arg1: memref<1x8x16xf32, #tpu.memory_space<vmem>>, %arg2: memref<8x2xf32, #tpu.memory_space<vmem>>, %arg3: memref<1x2xf32, #tpu.memory_space<vmem>>, %arg4: memref<2x8xf32, #tpu.memory_space<vmem>>, %arg5: memref<1x8xf32, #tpu.memory_space<vmem>>, %arg6: memref<1x8x16xf32, #tpu.memory_space<vmem>>) attributes {dimension_semantics = [#tpu.dimension_semantics<parallel>], iteration_bounds = array<i64: 2>, scalar_prefetch = 0 : i64, scratch_operands = 0 : i64, tpu.core_type = #tpu.core_type<tc>, window_params = [{transform_indices = @transform_0, window_bounds = array<i64: 1, 8, 16>}, {pipeline_mode = #tpu.pipeline_mode<synchronous>, transform_indices = @transform_1, window_bounds = array<i64: 8, 2>}, {pipeline_mode = #tpu.pipeline_mode<synchronous>, transform_indices = @transform_2, window_bounds = array<i64: 1, 2>}, {pipeline_mode = #tpu.pipeline_mode<synchronous>, transform_indices = @transform_3, window_bounds = array<i64: 2, 8>}, {pipeline_mode = #tpu.pipeline_mode<synchronous>, transform_indices = @transform_4, window_bounds = array<i64: 1, 8>}, {transform_indices = @transform_5, window_bounds = array<i64: 1, 8, 16>}]} {
    %c0 = arith.constant 0 : index
    %c0_0 = arith.constant 0 : index
    %c0_1 = arith.constant 0 : index
    %0 = vector.load %arg1[%c0, %c0_0, %c0_1] : memref<1x8x16xf32, #tpu.memory_space<vmem>>, vector<1x8x16xf32>
    %cst = arith.constant dense<0.000000e+00> : vector<1x8xf32>
    %1 = vector.multi_reduction <add>, %0, %cst [2] : vector<1x8x16xf32> to vector<1x8xf32>
    %cst_2 = arith.constant 6.250000e-02 : f32
    %2 = vector.broadcast %cst_2 : f32 to vector<1x8xf32>
    %3 = arith.mulf %1, %2 : vector<1x8xf32>
    %c0_3 = arith.constant 0 : index
    %c0_4 = arith.constant 0 : index
    %4 = vector.load %arg2[%c0_3, %c0_4] : memref<8x2xf32, #tpu.memory_space<vmem>>, vector<8x2xf32>
    %cst_5 = arith.constant dense<0.000000e+00> : vector<1x2xf32>
    %5 = tpu.matmul %3, %4, %cst_5 {dimension_numbers = #tpu.dot_dimension_numbers<[1], [0], [0], [1], [0, 0, 1, 1], [], []>} : vector<1x8xf32>, vector<8x2xf32>, vector<1x2xf32> -> vector<1x2xf32>
    %c0_6 = arith.constant 0 : index
    %c0_7 = arith.constant 0 : index
    %6 = vector.load %arg3[%c0_6, %c0_7] : memref<1x2xf32, #tpu.memory_space<vmem>>, vector<1x2xf32>
    %7 = arith.addf %5, %6 : vector<1x2xf32>
    %cst_8 = arith.constant 0.000000e+00 : f32
    %8 = vector.broadcast %cst_8 : f32 to vector<1x2xf32>
    %9 = arith.maximumf %7, %8 : vector<1x2xf32>
    %c0_9 = arith.constant 0 : index
    %c0_10 = arith.constant 0 : index
    %10 = vector.load %arg4[%c0_9, %c0_10] : memref<2x8xf32, #tpu.memory_space<vmem>>, vector<2x8xf32>
    %cst_11 = arith.constant dense<0.000000e+00> : vector<1x8xf32>
    %11 = tpu.matmul %9, %10, %cst_11 {dimension_numbers = #tpu.dot_dimension_numbers<[1], [0], [0], [1], [0, 0, 1, 1], [], []>} : vector<1x2xf32>, vector<2x8xf32>, vector<1x8xf32> -> vector<1x8xf32>
    %c0_12 = arith.constant 0 : index
    %c0_13 = arith.constant 0 : index
    %12 = vector.load %arg5[%c0_12, %c0_13] : memref<1x8xf32, #tpu.memory_space<vmem>>, vector<1x8xf32>
    %13 = arith.addf %11, %12 : vector<1x8xf32>
    %14 = arith.negf %13 : vector<1x8xf32>
    %15 = math.exp %14 : vector<1x8xf32>
    %cst_14 = arith.constant 1.000000e+00 : f32
    %16 = vector.broadcast %cst_14 : f32 to vector<1x8xf32>
    %17 = arith.addf %16, %15 : vector<1x8xf32>
    %18 = arith.divf %16, %17 : vector<1x8xf32>
    %19 = vector.shape_cast %18 : vector<1x8xf32> to vector<1x8x1xf32>
    %20 = vector.broadcast %19 : vector<1x8x1xf32> to vector<1x8x16xf32>
    %21 = arith.mulf %0, %20 : vector<1x8x16xf32>
    %c0_15 = arith.constant 0 : index
    %c0_16 = arith.constant 0 : index
    %c0_17 = arith.constant 0 : index
    %22 = vector.load %arg6[%c0_15, %c0_16, %c0_17] : memref<1x8x16xf32, #tpu.memory_space<vmem>>, vector<1x8x16xf32>
    tpu.vector_store %arg6[%c0_15, %c0_16, %c0_17], %21 {strides = array<i32>} : memref<1x8x16xf32, #tpu.memory_space<vmem>>, vector<1x8x16xf32>,
    return
  }
  func.func @transform_0(%arg0: i32) -> (i32, i32, i32) {
    %c0_i32 = arith.constant 0 : i32
    %c0_i32_0 = arith.constant 0 : i32
    %c0_i32_1 = arith.constant 0 : i32
    return %arg0, %c0_i32, %c0_i32_0 : i32, i32, i32
  }
  func.func @transform_1(%arg0: i32) -> (i32, i32) {
    %c0_i32 = arith.constant 0 : i32
    %c0_i32_0 = arith.constant 0 : i32
    %c0_i32_1 = arith.constant 0 : i32
    return %c0_i32, %c0_i32_0 : i32, i32
  }
  func.func @transform_2(%arg0: i32) -> (i32, i32) {
    %c0_i32 = arith.constant 0 : i32
    %c0_i32_0 = arith.constant 0 : i32
    %c0_i32_1 = arith.constant 0 : i32
    return %c0_i32, %c0_i32_0 : i32, i32
  }
  func.func @transform_3(%arg0: i32) -> (i32, i32) {
    %c0_i32 = arith.constant 0 : i32
    %c0_i32_0 = arith.constant 0 : i32
    %c0_i32_1 = arith.constant 0 : i32
    return %c0_i32, %c0_i32_0 : i32, i32
  }
  func.func @transform_4(%arg0: i32) -> (i32, i32) {
    %c0_i32 = arith.constant 0 : i32
    %c0_i32_0 = arith.constant 0 : i32
    %c0_i32_1 = arith.constant 0 : i32
    return %c0_i32, %c0_i32_0 : i32, i32
  }
  func.func @transform_5(%arg0: i32) -> (i32, i32, i32) {
    %c0_i32 = arith.constant 0 : i32
    %c0_i32_0 = arith.constant 0 : i32
    %c0_i32_1 = arith.constant 0 : i32
    return %arg0, %c0_i32, %c0_i32_0 : i32, i32, i32
  }
}

</mosaic_0001>

<llo_original>
// kernel: tpu_custom_call.1
$region0: #{tpu_custom_call.1}
  #allocation0 [shape = 'u32[]', space=smem, size = 0x4, offset = 0x4, fixed_abs, tag = 'smem constant byte address 0x4 - core index']
  #allocation1 [shape = 'u32[72,128]{1,0:T(1,128)}', space=vmem, size = 0x9000, scoped, tag = 'internal scratch']
  %s0 = inlined_call_operand.hbm [shape: f32[2,8,16], index: 0, kind: input, shape index: {}]
  %s1 = inlined_call_operand.vmem [shape: f32[8,2], index: 1, kind: input, shape index: {}]
  %s2 = inlined_call_operand.vmem [shape: f32[1,2], index: 2, kind: input, shape index: {}]
  %s3 = inlined_call_operand.vmem [shape: f32[2,8], index: 3, kind: input, shape index: {}]
  %s4 = inlined_call_operand.vmem [shape: f32[1,8], index: 4, kind: input, shape index: {}]
  %s5 = inlined_call_operand.hbm [shape: f32[2,8,16], index: 5, kind: output, shape index: {}]
  %s6 = sld [smem:[#allocation0]]
  $region57: #{tpu_custom_call.1} parent=0
    _
  %s8 = ssub.s32 1, %s6
  %s9 = scalar_select 0, %s8, %s6
  $region1: #{tpu_custom_call.1} parent=0
    #allocation2 [shape = 'u8[8192]{0}', space=vmem, size = 0x2000, scoped, tag = 'input window, operand 0']
    #allocation3 [shape = 's32[2]{0}', space=sflag, size = 0x8, scoped, tag = 'scoped memory for tpu_custom_call.1']
    #allocation4 [shape = 's32[2]{0}', space=sflag, size = 0x8, scoped, tag = 'scoped memory for tpu_custom_call.1']
    #allocation5 [shape = 'u8[8192]{0}', space=vmem, size = 0x2000, scoped, tag = 'output window, operand 0']
    %10 = vsyncpa [#allocation3], 0
    %s11 = scalar_lea.sflag [#allocation3], 1
    %12 = vsyncpa %s11, 0
    %13 = vsyncpa [#allocation4], 0
    %s14 = scalar_lea.sflag [#allocation4], 1
    %15 = vsyncpa %s14, 0
    loop: start=0, step=1, limit=4
    $region2: #{tpu_custom_call.1} parent=1 // loop_pre_header
      _
    $region3: #{tpu_custom_call.1} parent=1 // loop_header
      %s17 = sphi 0, %s21
      %p18 = scmp.ge.s32.totalorder %s17, 4
      %s27 = sphi 0, %s29
      %s30 = sphi 0, %s27
      %s31 = sphi 0, %s30
      %s47 = sphi 0, %s31
      %s51 = sphi 0, %s51
      %s53 = sphi 0, %s51
      %s54 = sphi 0, %s53
      %s68 = sphi 0, %s54
      %s72 = sphi 0, %s72
      %s74 = sphi 0, %s72
      %s75 = sphi 0, %s74
      %s89 = sphi 0, %s75
      %s93 = sphi 0, %s93
      %s95 = sphi 0, %s93
      %s96 = sphi 0, %s95
      %s110 = sphi 0, %s96
      %s114 = sphi 0, %s114
      %s116 = sphi 0, %s114
      %s117 = sphi 0, %s116
      %s131 = sphi 0, %s117
      %s137 = sphi 0, %s139
      %s140 = sphi 0, %s137
      %s141 = sphi 0, %s140
      %s157 = sphi 0, %s141
    $region4: #{tpu_custom_call.1} parent=1 // loop_header_branch
      %20 = sbr.rel (%p18) target = $region8
    $region5: #{tpu_custom_call.1} parent=1 // loop_body
      %s22 = ssub.s32 %s17, 1
      %s23 = ssub.s32 %s17, 2
      %s24 = sadd.s32 %s17, 1
      %s25 = ssub.s32 %s17, %s24
      %p26 = scmp.eq.s32.totalorder %s25, 0
      %s28 = sadd.s32 %s27, 1
      %s29 = scalar_select %p26, %s27, %s28
      %p32 = pneg %p26
      %p33 = scmp.eq.s32.totalorder %s17, 1
      %p34 = por %p32, %p33
      %p35 = scmp.ne.s32.totalorder %s27, %s30
      %p36 = scmp.eq.s32.totalorder %s17, 0
      %p37 = por %p35, %p36
      %p38 = scmp.ne.s32.totalorder %s27, %s30
      %p39 = scmp.eq.s32.totalorder %s22, 1
      %p40 = por %p38, %p39
      %p41 = scmp.ne.s32.totalorder %s30, %s31
      %p42 = scmp.eq.s32.totalorder %s22, 0
      %p43 = por %p41, %p42
      %p44 = scmp.ne.s32.totalorder %s30, %s31
      %p45 = scmp.eq.s32.totalorder %s23, 1
      %p46 = por %p44, %p45
      %p48 = scmp.ne.s32.totalorder %s31, %s47
      %p49 = scmp.eq.s32.totalorder %s23, 0
      %p50 = por %p48, %p49
      %s52 = sadd.s32 %s51, 1
      %p55 = scmp.eq.s32.totalorder %s17, 1
      %p56 = scmp.ne.s32.totalorder %s51, %s53
      %p57 = scmp.eq.s32.totalorder %s17, 0
      %p58 = por %p56, %p57
      %p59 = scmp.ne.s32.totalorder %s51, %s53
      %p60 = scmp.eq.s32.totalorder %s22, 1
      %p61 = por %p59, %p60
      %p62 = scmp.ne.s32.totalorder %s53, %s54
      %p63 = scmp.eq.s32.totalorder %s22, 0
      %p64 = por %p62, %p63
      %p65 = scmp.ne.s32.totalorder %s53, %s54
      %p66 = scmp.eq.s32.totalorder %s23, 1
      %p67 = por %p65, %p66
      %p69 = scmp.ne.s32.totalorder %s54, %s68
      %p70 = scmp.eq.s32.totalorder %s23, 0
      %p71 = por %p69, %p70
      %s73 = sadd.s32 %s72, 1
      %p76 = scmp.eq.s32.totalorder %s17, 1
      %p77 = scmp.ne.s32.totalorder %s72, %s74
      %p78 = scmp.eq.s32.totalorder %s17, 0
      %p79 = por %p77, %p78
      %p80 = scmp.ne.s32.totalorder %s72, %s74
      %p81 = scmp.eq.s32.totalorder %s22, 1
      %p82 = por %p80, %p81
      %p83 = scmp.ne.s32.totalorder %s74, %s75
      %p84 = scmp.eq.s32.totalorder %s22, 0
      %p85 = por %p83, %p84
      %p86 = scmp.ne.s32.totalorder %s74, %s75
      %p87 = scmp.eq.s32.totalorder %s23, 1
      %p88 = por %p86, %p87
      %p90 = scmp.ne.s32.totalorder %s75, %s89
      %p91 = scmp.eq.s32.totalorder %s23, 0
      %p92 = por %p90, %p91
      %s94 = sadd.s32 %s93, 1
      %p97 = scmp.eq.s32.totalorder %s17, 1
      %p98 = scmp.ne.s32.totalorder %s93, %s95
      %p99 = scmp.eq.s32.totalorder %s17, 0
      %p100 = por %p98, %p99
      %p101 = scmp.ne.s32.totalorder %s93, %s95
      %p102 = scmp.eq.s32.totalorder %s22, 1
      %p103 = por %p101, %p102
      %p104 = scmp.ne.s32.totalorder %s95, %s96
      %p105 = scmp.eq.s32.totalorder %s22, 0
      %p106 = por %p104, %p105
      %p107 = scmp.ne.s32.totalorder %s95, %s96
      %p108 = scmp.eq.s32.totalorder %s23, 1
      %p109 = por %p107, %p108
      %p111 = scmp.ne.s32.totalorder %s96, %s110
      %p112 = scmp.eq.s32.totalorder %s23, 0
      %p113 = por %p111, %p112
      %s115 = sadd.s32 %s114, 1
      %p118 = scmp.eq.s32.totalorder %s17, 1
      %p119 = scmp.ne.s32.totalorder %s114, %s116
      %p120 = scmp.eq.s32.totalorder %s17, 0
      %p121 = por %p119, %p120
      %p122 = scmp.ne.s32.totalorder %s114, %s116
      %p123 = scmp.eq.s32.totalorder %s22, 1
      %p124 = por %p122, %p123
      %p125 = scmp.ne.s32.totalorder %s116, %s117
      %p126 = scmp.eq.s32.totalorder %s22, 0
      %p127 = por %p125, %p126
      %p128 = scmp.ne.s32.totalorder %s116, %s117
      %p129 = scmp.eq.s32.totalorder %s23, 1
      %p130 = por %p128, %p129
      %p132 = scmp.ne.s32.totalorder %s117, %s131
      %p133 = scmp.eq.s32.totalorder %s23, 0
      %p134 = por %p132, %p133
      %s135 = ssub.s32 %s17, %s24
      %p136 = scmp.eq.s32.totalorder %s135, 0
      %s138 = sadd.s32 %s137, 1
      %s139 = scalar_select %p136, %s137, %s138
      %p142 = pneg %p136
      %p143 = scmp.eq.s32.totalorder %s17, 1
      %p144 = por %p142, %p143
      %p145 = scmp.ne.s32.totalorder %s137, %s140
      %p146 = scmp.eq.s32.totalorder %s17, 0
      %p147 = por %p145, %p146
      %p148 = scmp.ne.s32.totalorder %s137, %s140
      %p149 = scmp.eq.s32.totalorder %s22, 1
      %p150 = por %p148, %p149
      %p151 = scmp.ne.s32.totalorder %s140, %s141
      %p152 = scmp.eq.s32.totalorder %s22, 0
      %p153 = por %p151, %p152
      %p154 = scmp.ne.s32.totalorder %s140, %s141
      %p155 = scmp.eq.s32.totalorder %s23, 1
      %p156 = por %p154, %p155
      %p158 = scmp.ne.s32.totalorder %s141, %s157
      %p159 = scmp.eq.s32.totalorder %s23, 0
      %p160 = por %p158, %p159
      %p161 = scmp.le.s32.totalorder 1, %s17
      %p162 = scmp.lt.s32.totalorder %s17, 3
      %p163 = pnand %p161, %p162
      %p164 = pneg %p163
      // Predicated region
      $region9: #{tpu_custom_call.1} parent=5 // pred_check
        _
      $region10: #{tpu_custom_call.1} parent=5 // pred_check_branch
        %166 = sbr.rel (%p163) target = $region12
      $region11: #{tpu_custom_call.1} parent=5 // pred_region
        %s167 = ssub.s32 %s17, 1
        // Predicated region
        $region13: #{tpu_custom_call.1} parent=11 // pred_check
          %p168 = pneg %p64
        $region14: #{tpu_custom_call.1} parent=11 // pred_check_branch
          %170 = sbr.rel (%p168) target = $region16
        $region15: #{tpu_custom_call.1} parent=11 // pred_region
          _
        $region16: #{tpu_custom_call.1} parent=11 // pred_fallthru
          _
        // Predicated region
        $region17: #{tpu_custom_call.1} parent=11 // pred_check
          %p171 = pneg %p85
        $region18: #{tpu_custom_call.1} parent=11 // pred_check_branch
          %173 = sbr.rel (%p171) target = $region20
        $region19: #{tpu_custom_call.1} parent=11 // pred_region
          _
        $region20: #{tpu_custom_call.1} parent=11 // pred_fallthru
          _
        // Predicated region
        $region21: #{tpu_custom_call.1} parent=11 // pred_check
          %p174 = pneg %p106
        $region22: #{tpu_custom_call.1} parent=11 // pred_check_branch
          %176 = sbr.rel (%p174) target = $region24
        $region23: #{tpu_custom_call.1} parent=11 // pred_region
          _
        $region24: #{tpu_custom_call.1} parent=11 // pred_fallthru
          _
        // Predicated region
        $region25: #{tpu_custom_call.1} parent=11 // pred_check
          %p177 = pneg %p127
        $region26: #{tpu_custom_call.1} parent=11 // pred_check_branch
          %179 = sbr.rel (%p177) target = $region28
        $region27: #{tpu_custom_call.1} parent=11 // pred_region
          _
        $region28: #{tpu_custom_call.1} parent=11 // pred_fallthru
          _
      $region12: #{tpu_custom_call.1} parent=5 // pred_fallthru
        _
      %p180 = scmp.lt.s32.totalorder %s17, 2
      // Predicated region
      $region29: #{tpu_custom_call.1} parent=5 // pred_check
        %p181 = pneg %p180
      $region30: #{tpu_custom_call.1} parent=5 // pred_check_branch
        %183 = sbr.rel (%p181) target = $region32
      $region31: #{tpu_custom_call.1} parent=5 // pred_region
        // Predicated region
        $region33: #{tpu_custom_call.1} parent=31 // pred_check
          %p184 = pneg %p37
        $region34: #{tpu_custom_call.1} parent=31 // pred_check_branch
          %186 = sbr.rel (%p184) target = $region36
        $region35: #{tpu_custom_call.1} parent=31 // pred_region
          %s187 = sand.u32 %s27, 1
          %s188 = scalar_lea.sflag [#allocation3], %s187
          %s189 = sand.u32 %s27, 1
          %s190 = smul.addr %s189, 8
          %s191 = scalar_lea.vmem [#allocation2], %s190
          %193 = vsyncadd %s188, 0
          %s194 = smul.addr %s17, 8
          %s195 = scalar_lea.hbm %s0, %s194
          %s197 = sshll.u32 %s195, 4
          %s198 = int_to_ptr.hbm [resolvable:$true] %s197
          %s199 = sshll.u32 %s191, 4
          %s200 = int_to_ptr.vmem [resolvable:$true] %s199
          %202 = dma.hbm_to_vmem [thread:$0]  %s198, 128, %s200, %s188
        $region36: #{tpu_custom_call.1} parent=31 // pred_fallthru
          _
      $region32: #{tpu_custom_call.1} parent=5 // pred_fallthru
        _
      %p203 = scmp.le.s32.totalorder 1, %s17
      %p204 = scmp.lt.s32.totalorder %s17, 3
      %p205 = pnand %p203, %p204
      %p206 = pneg %p205
      // Predicated region
      $region37: #{tpu_custom_call.1} parent=5 // pred_check
        _
      $region38: #{tpu_custom_call.1} parent=5 // pred_check_branch
        %208 = sbr.rel (%p205) target = $region40
      $region39: #{tpu_custom_call.1} parent=5 // pred_region
        %s209 = ssub.s32 %s17, 1
        %s210 = sand.u32 %s30, 1
        %s211 = scalar_lea.sflag [#allocation3], %s210
        %s212 = sand.u32 %s30, 1
        %s213 = smul.addr %s212, 8
        %s214 = scalar_lea.vmem [#allocation2], %s213
        // Predicated region
        $region41: #{tpu_custom_call.1} parent=39 // pred_check
          %p215 = pneg %p43
        $region42: #{tpu_custom_call.1} parent=39 // pred_check_branch
          %217 = sbr.rel (%p215) target = $region44
        $region43: #{tpu_custom_call.1} parent=39 // pred_region
          %219 = dma.done %s211, 128
        $region44: #{tpu_custom_call.1} parent=39 // pred_fallthru
          _
        %s220 = sand.u32 %s30, 1
        %s221 = scalar_lea.sflag [#allocation3], %s220
        %s222 = sand.u32 %s30, 1
        %s223 = smul.addr %s222, 8
        %s224 = scalar_lea.vmem [#allocation2], %s223
        %p225 = pneg %p43
        %p226 = pneg %p40
        %p227 = pneg %p64
        %p228 = pneg %p61
        %p229 = pneg %p85
        %p230 = pneg %p82
        %p231 = pneg %p106
        %p232 = pneg %p103
        %p233 = pneg %p127
        %p234 = pneg %p124
        %p235 = pneg %p153
        %p236 = pneg %p150
        %s237 = sand.u32 %s140, 1
        %s238 = scalar_lea.sflag [#allocation4], %s237
        %s239 = sand.u32 %s140, 1
        %s240 = smul.addr %s239, 8
        %s241 = scalar_lea.vmem [#allocation5], %s240
        %v242 = vld [vmem:[%s214] sm:$0xff]
        %vm243 = vcmask 130048
        %v244 = vsel %vm243, %v242, 0.0
        %245 = vadd.xlane.f32.xlu0 %v244
        %v246 = vpop.xlane.xlu0 %245
        %v247 = vmul.f32 %v246, 0.0625
        %v248 = vld [vmem:[%s1] sm:$0xff]
        %v249 = vld [vmem:[%s2] sm:$0x1]
        %v251 = vlaneseq
        %v252 = vand.u32 %v251, 127
        %v253 = vperm.slane %v247, %v252
        %vm254 = vcmask 64512
        %v255 = vsel %vm254, %v253, 0
        %257 = vmatpush.msra.mxu0 0.0
        %258 = vmatpush.msra.mxu0 0.0
        %259 = vmatpush.msra.mxu0 0.0
        %260 = vmatpush.msra.mxu0 0.0
        %261 = vmatpush.msra.mxu0 0.0
        %262 = vmatpush.msra.mxu0 0.0
        %263 = vmatpush.msra.mxu0 0.0
        %264 = vmatpush.msra.mxu0 0.0
        %265 = vmatpush.msra.mxu0 0.0
        %266 = vmatpush.msra.mxu0 0.0
        %267 = vmatpush.msra.mxu0 0.0
        %268 = vmatpush.msra.mxu0 0.0
        %269 = vmatpush.msra.mxu0 0.0
        %270 = vmatpush.msra.mxu0 0.0
        %271 = vmatpush.msra.mxu0 0.0
        %272 = vmatpush.msra.mxu0 %v248
        %273 = vmatmul.f32.gmra.mxu0 %v255
        %v274 = vpop.f32.mrf.mxu0
        %v275 = vadd.f32 %v249, %v274
        %276 = vdwg.mxu0
        %v277 = vmax.f32 %v275, 0.0
        %v278 = vld [vmem:[%s3] sm:$0x3]
        %v279 = vld [vmem:[%s4] sm:$0x1]
        %vm280 = vcmask 15360
        %v282 = vsel %vm280, %v277, 0
        %vm284 = vcmask 1041408
        %v286 = vsel %vm284, %v278, 0
        %288 = vmatpush.msra.mxu0 0.0
        %289 = vmatpush.msra.mxu0 0.0
        %290 = vmatpush.msra.mxu0 0.0
        %291 = vmatpush.msra.mxu0 0.0
        %292 = vmatpush.msra.mxu0 0.0
        %293 = vmatpush.msra.mxu0 0.0
        %294 = vmatpush.msra.mxu0 0.0
        %295 = vmatpush.msra.mxu0 0.0
        %296 = vmatpush.msra.mxu0 0.0
        %297 = vmatpush.msra.mxu0 0.0
        %298 = vmatpush.msra.mxu0 0.0
        %299 = vmatpush.msra.mxu0 0.0
        %300 = vmatpush.msra.mxu0 0.0
        %301 = vmatpush.msra.mxu0 0.0
        %302 = vmatpush.msra.mxu0 0.0
        %303 = vmatpush.msra.mxu0 %v286
        %304 = vmatmul.f32.gmra.mxu0 %v282
        %v305 = vpop.f32.mrf.mxu0
        %v306 = vadd.f32 %v279, %v305
        %307 = vdwg.mxu0
        %v308 = vxor.u32 %v306, 2147483648
        %v309 = vmul.f32 %v308, 1.442695
        %v310 = vpow.pop %v309
        %v311 = vadd.f32 %v310, 1.0
        %v312 = vrcp.pop %v311
        %v313 = vmul.f32 %v311, %v312
        %v314 = vsub.f32 1.0, %v313
        %v315 = vmul.f32 %v312, %v314
        %v316 = vadd.f32 %v312, %v315
        %vm317 = vweird.f32 %v311
        %vm318 = vweird.f32 %v312
        %vm319 = vmor %vm317, %vm318
        %v320 = vsel %vm319, %v312, %v316
        %v321 = vand.u32 2147483647, %v311
        %vm322 = vcmp.eq.f32.partialorder %v321, 8.507059e+37
        %v323 = vand.u32 %v311, 2147483648
        %v324 = vor.u32 1.1754944e-38, %v323
        %v325 = vsel %vm322, %v324, %v320
        %v326 = vmul.f32 1.0, %v325
        %v327 = vperm.slane %v326, 0
        %v328 = vlaneseq
        %v329 = vshrl.u32 %v328, 7
        %331 = vset.pattern.permute.xlu0 %v329
        %332 = vperm.xlu0 %331, %v327
        %v333 = vpop.permute.xlu0 %332
        %v334 = vmul.f32 %v242, %v333
        %335 = vst.msk [vmem:[%s241] sm:$0xff] %vm243, %v334
        %s336 = sand.u32 %s140, 1
        %s337 = scalar_lea.sflag [#allocation4], %s336
        %s338 = sand.u32 %s140, 1
        %s339 = smul.addr %s338, 8
        %s340 = scalar_lea.vmem [#allocation5], %s339
        // Predicated region
        $region45: #{tpu_custom_call.1} parent=39 // pred_check
          %p341 = pneg %p150
        $region46: #{tpu_custom_call.1} parent=39 // pred_check_branch
          %343 = sbr.rel (%p341) target = $region48
        $region47: #{tpu_custom_call.1} parent=39 // pred_region
          %345 = vsyncadd %s337, 0
          %s346 = smul.addr %s22, 8
          %s347 = scalar_lea.hbm %s5, %s346
          %s349 = sshll.u32 %s340, 4
          %s350 = int_to_ptr.vmem [resolvable:$true] %s349
          %s351 = sshll.u32 %s347, 4
          %s352 = int_to_ptr.hbm [resolvable:$true] %s351
          %354 = dma.vmem_to_hbm [thread:$0]  %s350, 128, %s352, %s337
        $region48: #{tpu_custom_call.1} parent=39 // pred_fallthru
          _
      $region40: #{tpu_custom_call.1} parent=5 // pred_fallthru
        _
      %p355 = scmp.le.s32.totalorder 2, %s17
      // Predicated region
      $region49: #{tpu_custom_call.1} parent=5 // pred_check
        %p356 = pneg %p355
      $region50: #{tpu_custom_call.1} parent=5 // pred_check_branch
        %358 = sbr.rel (%p356) target = $region52
      $region51: #{tpu_custom_call.1} parent=5 // pred_region
        %s359 = ssub.s32 %s17, 2
        // Predicated region
        $region53: #{tpu_custom_call.1} parent=51 // pred_check
          %p360 = pneg %p156
        $region54: #{tpu_custom_call.1} parent=51 // pred_check_branch
          %362 = sbr.rel (%p360) target = $region56
        $region55: #{tpu_custom_call.1} parent=51 // pred_region
          %s363 = sand.u32 %s141, 1
          %s364 = scalar_lea.sflag [#allocation4], %s363
          %s365 = sand.u32 %s141, 1
          %s366 = smul.addr %s365, 8
          %s367 = scalar_lea.vmem [#allocation5], %s366
          %369 = dma.done %s364, 128
        $region56: #{tpu_custom_call.1} parent=51 // pred_fallthru
          _
      $region52: #{tpu_custom_call.1} parent=5 // pred_fallthru
        _
    $region6: #{tpu_custom_call.1} parent=1 // loop_footer
      %s21 = sadd.s32 1, %s17
    $region7: #{tpu_custom_call.1} parent=1 // loop_footer_branch
      %16 = sbr.rel target = $region3
    $region8: #{tpu_custom_call.1} parent=1 // loop_exit
      _
    %370 = vsyncpa [#allocation3], 1
    %s371 = scalar_lea.sflag [#allocation3], 1
    %372 = vsyncpa %s371, 1
    %373 = vsyncpa [#allocation4], 1
    %s374 = scalar_lea.sflag [#allocation4], 1
    %375 = vsyncpa %s374, 1

</llo_original>
